<compile_context>
chip_gen: v7x
topology: tpu7x:2x2x1
jax: 0.10.0
libtpu: 0.0.40
codegen_flags: <defaults>
</compile_context>

<pallas_src>
import jax
import jax.numpy as jnp
from jax.experimental import pallas as pl
from jax.experimental.pallas import tpu as pltpu


def _round_up(x, m):
    return (x + m - 1) // m * m


def _make_t_combined(n, out_w):
    """(n, out_w) constant. probs @ T_combined yields, per row:
       lanes 0..n      : taus   (exclusive prefix sums, lane 0 == 0)
       lanes n+1..2n   : tau_hats (prefix sum + 0.5*current)
       lanes 2n+1..end : zeros (lane 2n+1 is overwritten with entropy in-kernel)
    """
    i = jnp.arange(n, dtype=jnp.int32)[:, None]       # contraction index
    j = jnp.arange(out_w, dtype=jnp.int32)[None, :]   # output lane
    # taus block: taus[:, j] = sum_{i < j} probs[:, i]   for j in [0, n]
    t_tau = ((j <= n) & (i < j)).astype(jnp.float32)
    # tau_hats block: lane j corresponds to column c = j - (n+1) in [0, n-1]
    c = j - (n + 1)
    in_hat = (j >= n + 1) & (j <= 2 * n)
    t_hat = jnp.where(in_hat & (i < c), 1.0,
                      jnp.where(in_hat & (i == c), 0.5, 0.0)).astype(jnp.float32)
    return t_tau + t_hat


def _fpn_kernel(x_ref, w_ref, b_ref, t_ref, out_ref):
    # x_ref: (TB, E)  w_ref: (E, N)  b_ref: (1, N)  t_ref: (N, OUT_W)
    # out_ref: (TB, OUT_W)  -> [taus(N+1) | tau_hats(N) | entropy(1) | pad]
    n = w_ref.shape[1]

    logits = jnp.dot(x_ref[...], w_ref[...],
                     preferred_element_type=jnp.float32) + b_ref[...]      # (TB, N)

    # log_softmax along the lane (N) axis, all in f32.
    m = jnp.max(logits, axis=-1, keepdims=True)
    z = logits - m
    lse = jnp.log(jnp.sum(jnp.exp(z), axis=-1, keepdims=True))
    log_probs = z - lse
    probs = jnp.exp(log_probs)                                             # (TB, N)

    # One fused triangular matmul produces taus AND tau_hats lane-dense.
    slab = jnp.dot(probs, t_ref[...],
                   preferred_element_type=jnp.float32)                     # (TB, OUT_W)

    # Entropy: lane reduce (XLU) + splice into lane 2n+1 of the slab.
    ent = -jnp.sum(log_probs * probs, axis=-1, keepdims=True)              # (TB, 1)
    lane = jax.lax.broadcasted_iota(jnp.int32, slab.shape, 1)
    slab = jnp.where(lane == 2 * n + 1, ent, slab)

    out_ref[...] = slab.astype(out_ref.dtype)


def fraction_proposal_pallas(state_embeddings, w, b, *, block_b=1024):
    """state_embeddings: (B, E), w: (E, N), b: (N,)
    -> (taus (B, N+1), tau_hats (B, N), entropies (B, 1))"""
    B, E = state_embeddings.shape
    N = w.shape[1]
    out_w = max(128, _round_up(2 * N + 2, 128))

    # Large batch tile to amortize per-step overhead, but keep >=2 grid steps
    # when B allows so v7x's two TensorCores both get a share of the
    # "parallel" grid axis.
    tb = min(block_b, _round_up(pl.cdiv(B, 2), 8))
    tb = max(tb, 8)
    b_pad = _round_up(B, tb)

    x = state_embeddings
    if b_pad != B:
        x = jnp.pad(x, ((0, b_pad - B), (0, 0)))
    b2d = b.reshape(1, N).astype(jnp.float32)
    t_combined = _make_t_combined(N, out_w)

    slab = pl.pallas_call(
        _fpn_kernel,
        out_shape=jax.ShapeDtypeStruct((b_pad, out_w), jnp.float32),
        grid=(b_pad // tb,),
        in_specs=[
            pl.BlockSpec((tb, E), lambda i: (i, 0)),        # x: tiled over batch
            pl.BlockSpec((E, N), lambda i: (0, 0)),         # weights: VMEM-resident
            pl.BlockSpec((1, N), lambda i: (0, 0)),         # bias: VMEM-resident
            pl.BlockSpec((N, out_w), lambda i: (0, 0)),     # fused tri-matrix: resident
        ],
        out_specs=pl.BlockSpec((tb, out_w), lambda i: (i, 0)),
        compiler_params=pltpu.CompilerParams(
            dimension_semantics=("parallel",)),
    )(x, w, b2d, t_combined)

    out_dtype = state_embeddings.dtype
    taus = slab[:B, 0:N + 1].astype(out_dtype)
    tau_hats = slab[:B, N + 1:2 * N + 1].astype(out_dtype)
    ent = slab[:B, 2 * N + 1:2 * N + 2].astype(out_dtype)
    return taus, tau_hats, ent


def fraction_proposal_ref(state_embeddings, w, b):
    logits = state_embeddings @ w + b
    log_probs = jax.nn.log_softmax(logits, axis=1)
    probs = jnp.exp(log_probs)
    taus_1_n = jnp.cumsum(probs, axis=1)
    tau_0 = jnp.zeros((state_embeddings.shape[0], 1), state_embeddings.dtype)
    taus = jnp.concatenate([tau_0, taus_1_n], axis=1)
    tau_hats = (taus[:, :-1] + taus[:, 1:]) / 2.0
    entropies = -(log_probs * probs).sum(axis=-1, keepdims=True)
    return taus, tau_hats, entropies


if __name__ == "__main__":
    # Module defaults: N=32, embedding_dim=512.  Small batch for the self-test.
    N = 32
    embedding_dim = 512
    B = 4

    key = jax.random.PRNGKey(0)
    k0, k1 = jax.random.split(key, 2)

    state_embeddings = jax.random.normal(k0, (B, embedding_dim), jnp.float32)
    # xavier_uniform(gain=0.01)-scale weights; bias is initialized to 0 in the module.
    w = jax.random.normal(k1, (embedding_dim, N), jnp.float32) * 0.01
    b = jnp.zeros((N,), jnp.float32)

    taus, tau_hats, ent = fraction_proposal_pallas(state_embeddings, w, b)
    taus, tau_hats, ent = jax.block_until_ready((taus, tau_hats, ent))

    taus_r, tau_hats_r, ent_r = fraction_proposal_ref(state_embeddings, w, b)

    assert taus.shape == (B, N + 1)
    assert tau_hats.shape == (B, N)
    assert ent.shape == (B, 1)
    assert jnp.allclose(taus, taus_r, atol=3e-3, rtol=3e-3), "taus mismatch"
    assert jnp.allclose(tau_hats, tau_hats_r, atol=3e-3, rtol=3e-3), "tau_hats mismatch"
    assert jnp.allclose(ent, ent_r, atol=3e-3, rtol=3e-3), "entropies mismatch"

    print("KERNEL_OK")
</pallas_src>

<mosaic_0001>
module attributes {stable_mosaic.version = 11 : i64} {
  func.func @_fpn_kernel(%arg0: i32, %arg1: memref<8x512xf32, #tpu.memory_space<vmem>>, %arg2: memref<512x32xf32, #tpu.memory_space<vmem>>, %arg3: memref<1x32xf32, #tpu.memory_space<vmem>>, %arg4: memref<32x128xf32, #tpu.memory_space<vmem>>, %arg5: memref<8x128xf32, #tpu.memory_space<vmem>>) attributes {dimension_semantics = [#tpu.dimension_semantics<parallel>], iteration_bounds = array<i64: 1>, scalar_prefetch = 0 : i64, scratch_operands = 0 : i64, tpu.core_type = #tpu.core_type<tc>, window_params = [{transform_indices = @transform_0, window_bounds = array<i64: 8, 512>}, {pipeline_mode = #tpu.pipeline_mode<synchronous>, transform_indices = @transform_1, window_bounds = array<i64: 512, 32>}, {pipeline_mode = #tpu.pipeline_mode<synchronous>, transform_indices = @transform_2, window_bounds = array<i64: 1, 32>}, {pipeline_mode = #tpu.pipeline_mode<synchronous>, transform_indices = @transform_3, window_bounds = array<i64: 32, 128>}, {transform_indices = @transform_4, window_bounds = array<i64: 8, 128>}]} {
    %c0 = arith.constant 0 : index
    %c0_0 = arith.constant 0 : index
    %0 = vector.load %arg1[%c0, %c0_0] : memref<8x512xf32, #tpu.memory_space<vmem>>, vector<8x512xf32>
    %c0_1 = arith.constant 0 : index
    %c0_2 = arith.constant 0 : index
    %1 = vector.load %arg2[%c0_1, %c0_2] : memref<512x32xf32, #tpu.memory_space<vmem>>, vector<512x32xf32>
    %cst = arith.constant dense<0.000000e+00> : vector<8x32xf32>
    %2 = tpu.matmul %0, %1, %cst {dimension_numbers = #tpu.dot_dimension_numbers<[1], [0], [0], [1], [0, 0, 1, 1], [], []>} : vector<8x512xf32>, vector<512x32xf32>, vector<8x32xf32> -> vector<8x32xf32>
    %c0_3 = arith.constant 0 : index
    %c0_4 = arith.constant 0 : index
    %3 = vector.load %arg3[%c0_3, %c0_4] : memref<1x32xf32, #tpu.memory_space<vmem>>, vector<1x32xf32>
    %4 = vector.broadcast %3 : vector<1x32xf32> to vector<8x32xf32>
    %5 = arith.addf %2, %4 : vector<8x32xf32>
    %cst_5 = arith.constant dense<0xFF800000> : vector<8xf32>
    %6 = vector.multi_reduction <maximumf>, %5, %cst_5 [1] : vector<8x32xf32> to vector<8xf32>
    %7 = vector.shape_cast %6 : vector<8xf32> to vector<8x1xf32>
    %8 = vector.broadcast %7 : vector<8x1xf32> to vector<8x32xf32>
    %9 = arith.subf %5, %8 : vector<8x32xf32>
    %10 = math.exp %9 : vector<8x32xf32>
    %cst_6 = arith.constant dense<0.000000e+00> : vector<8xf32>
    %11 = vector.multi_reduction <add>, %10, %cst_6 [1] : vector<8x32xf32> to vector<8xf32>
    %12 = vector.shape_cast %11 : vector<8xf32> to vector<8x1xf32>
    %13 = math.log %12 : vector<8x1xf32>
    %14 = vector.broadcast %13 : vector<8x1xf32> to vector<8x32xf32>
    %15 = arith.subf %9, %14 : vector<8x32xf32>
    %16 = math.exp %15 : vector<8x32xf32>
    %c0_7 = arith.constant 0 : index
    %c0_8 = arith.constant 0 : index
    %17 = vector.load %arg4[%c0_7, %c0_8] : memref<32x128xf32, #tpu.memory_space<vmem>>, vector<32x128xf32>
    %cst_9 = arith.constant dense<0.000000e+00> : vector<8x128xf32>
    %18 = tpu.matmul %16, %17, %cst_9 {dimension_numbers = #tpu.dot_dimension_numbers<[1], [0], [0], [1], [0, 0, 1, 1], [], []>} : vector<8x32xf32>, vector<32x128xf32>, vector<8x128xf32> -> vector<8x128xf32>
    %19 = arith.mulf %15, %16 : vector<8x32xf32>
    %cst_10 = arith.constant dense<0.000000e+00> : vector<8xf32>
    %20 = vector.multi_reduction <add>, %19, %cst_10 [1] : vector<8x32xf32> to vector<8xf32>
    %21 = vector.shape_cast %20 : vector<8xf32> to vector<8x1xf32>
    %cst_11 = arith.constant 0.000000e+00 : f32
    %22 = vector.broadcast %cst_11 : f32 to vector<8x1xf32>
    %23 = arith.subf %22, %21 : vector<8x1xf32>
    %24 = tpu.iota {dimensions = array<i32: 1>} : vector<8x128xi32>
    %c65_i32 = arith.constant 65 : i32
    %25 = vector.broadcast %c65_i32 : i32 to vector<8x128xi32>
    %26 = arith.cmpi eq, %24, %25 : vector<8x128xi32>
    %27 = vector.shape_cast %23 : vector<8x1xf32> to vector<8x1xf32>
    %28 = vector.broadcast %27 : vector<8x1xf32> to vector<8x128xf32>
    %29 = arith.select %26, %28, %18 : vector<8x128xi1>, vector<8x128xf32>
    %c0_12 = arith.constant 0 : index
    %c0_13 = arith.constant 0 : index
    %30 = vector.load %arg5[%c0_12, %c0_13] : memref<8x128xf32, #tpu.memory_space<vmem>>, vector<8x128xf32>
    tpu.vector_store %arg5[%c0_12, %c0_13], %29 {strides = array<i32>} : memref<8x128xf32, #tpu.memory_space<vmem>>, vector<8x128xf32>,
    return
  }
  func.func @transform_0(%arg0: i32) -> (i32, i32) {
    %c0_i32 = arith.constant 0 : i32
    %c0_i32_0 = arith.constant 0 : i32
    return %arg0, %c0_i32 : i32, i32
  }
  func.func @transform_1(%arg0: i32) -> (i32, i32) {
    %c0_i32 = arith.constant 0 : i32
    %c0_i32_0 = arith.constant 0 : i32
    %c0_i32_1 = arith.constant 0 : i32
    return %c0_i32, %c0_i32_0 : i32, i32
  }
  func.func @transform_2(%arg0: i32) -> (i32, i32) {
    %c0_i32 = arith.constant 0 : i32
    %c0_i32_0 = arith.constant 0 : i32
    %c0_i32_1 = arith.constant 0 : i32
    return %c0_i32, %c0_i32_0 : i32, i32
  }
  func.func @transform_3(%arg0: i32) -> (i32, i32) {
    %c0_i32 = arith.constant 0 : i32
    %c0_i32_0 = arith.constant 0 : i32
    %c0_i32_1 = arith.constant 0 : i32
    return %c0_i32, %c0_i32_0 : i32, i32
  }
  func.func @transform_4(%arg0: i32) -> (i32, i32) {
    %c0_i32 = arith.constant 0 : i32
    %c0_i32_0 = arith.constant 0 : i32
    return %arg0, %c0_i32 : i32, i32
  }
}

</mosaic_0001>

<llo_original>
// kernel: tpu_custom_call.1
$region0: #{tpu_custom_call.1}
  #allocation0 [shape = 'u32[]', space=smem, size = 0x4, offset = 0x4, fixed_abs, tag = 'smem constant byte address 0x4 - core index']
  #allocation1 [shape = 'u32[144,128]{1,0:T(1,128)}', space=vmem, size = 0x12000, scoped, tag = 'internal scratch']
  %s0 = inlined_call_operand.vmem [shape: f32[8,512], index: 0, kind: input, shape index: {}]
  %s1 = inlined_call_operand.vmem [shape: f32[512,32], index: 1, kind: input, shape index: {}]
  %s2 = inlined_call_operand.vmem [shape: f32[1,32], index: 2, kind: input, shape index: {}]
  %s3 = inlined_call_operand.vmem [shape: f32[32,128], index: 3, kind: input, shape index: {}]
  %s4 = inlined_call_operand.hbm [shape: f32[8,128], index: 4, kind: output, shape index: {}]
  %s5 = sld [smem:[#allocation0]]
  $region26: #{tpu_custom_call.1} parent=0
    _
  %s7 = ssub.s32 1, %s5
  %s8 = scalar_select 0, %s7, %s5
  $region1: #{tpu_custom_call.1} parent=0
    #allocation2 [shape = 'u8[4096]{0}', space=vmem, size = 0x1000, scoped, tag = 'output window, operand 0, single buffered']
    #allocation3 [shape = 's32[1]{0}', space=sflag, size = 0x4, scoped, tag = 'scoped memory for tpu_custom_call.1']
    %9 = vsyncpa [#allocation3], 0
    // Predicated region
    $region2: #{tpu_custom_call.1} parent=1 // pred_check
      _
    $region3: #{tpu_custom_call.1} parent=1 // pred_check_branch
      %11 = sbr.rel (0) target = $region5
    $region4: #{tpu_custom_call.1} parent=1 // pred_region
      _
    $region5: #{tpu_custom_call.1} parent=1 // pred_fallthru
      _
    // Predicated region
    $region6: #{tpu_custom_call.1} parent=1 // pred_check
      _
    $region7: #{tpu_custom_call.1} parent=1 // pred_check_branch
      %13 = sbr.rel (0) target = $region9
    $region8: #{tpu_custom_call.1} parent=1 // pred_region
      _
    $region9: #{tpu_custom_call.1} parent=1 // pred_fallthru
      _
    // Predicated region
    $region10: #{tpu_custom_call.1} parent=1 // pred_check
      _
    $region11: #{tpu_custom_call.1} parent=1 // pred_check_branch
      %15 = sbr.rel (0) target = $region13
    $region12: #{tpu_custom_call.1} parent=1 // pred_region
      _
    $region13: #{tpu_custom_call.1} parent=1 // pred_fallthru
      _
    // Predicated region
    $region14: #{tpu_custom_call.1} parent=1 // pred_check
      _
    $region15: #{tpu_custom_call.1} parent=1 // pred_check_branch
      %17 = sbr.rel (0) target = $region17
    $region16: #{tpu_custom_call.1} parent=1 // pred_region
      _
    $region17: #{tpu_custom_call.1} parent=1 // pred_fallthru
      _
    %v18 = vld [vmem:[%s0] sm:$0xff]
    %v19 = vld [vmem:[%s0 + $0x8] sm:$0xff]
    %v20 = vld [vmem:[%s0 + $0x10] sm:$0xff]
    %v21 = vld [vmem:[%s0 + $0x18] sm:$0xff]
    %v22 = vld [vmem:[%s1] sm:$0xff]
    %v23 = vld [vmem:[%s1 + $0x8] sm:$0xff]
    %v24 = vld [vmem:[%s1 + $0x10] sm:$0xff]
    %v25 = vld [vmem:[%s1 + $0x18] sm:$0xff]
    %v26 = vld [vmem:[%s1 + $0x20] sm:$0xff]
    %v27 = vld [vmem:[%s1 + $0x28] sm:$0xff]
    %v28 = vld [vmem:[%s1 + $0x30] sm:$0xff]
    %v29 = vld [vmem:[%s1 + $0x38] sm:$0xff]
    %v30 = vld [vmem:[%s1 + $0x40] sm:$0xff]
    %v31 = vld [vmem:[%s1 + $0x48] sm:$0xff]
    %v32 = vld [vmem:[%s1 + $0x50] sm:$0xff]
    %v33 = vld [vmem:[%s1 + $0x58] sm:$0xff]
    %v34 = vld [vmem:[%s1 + $0x60] sm:$0xff]
    %v35 = vld [vmem:[%s1 + $0x68] sm:$0xff]
    %v36 = vld [vmem:[%s1 + $0x70] sm:$0xff]
    %v37 = vld [vmem:[%s1 + $0x78] sm:$0xff]
    %v38 = vld [vmem:[%s1 + $0x80] sm:$0xff]
    %v39 = vld [vmem:[%s1 + $0x88] sm:$0xff]
    %v40 = vld [vmem:[%s1 + $0x90] sm:$0xff]
    %v41 = vld [vmem:[%s1 + $0x98] sm:$0xff]
    %v42 = vld [vmem:[%s1 + $0xa0] sm:$0xff]
    %v43 = vld [vmem:[%s1 + $0xa8] sm:$0xff]
    %v44 = vld [vmem:[%s1 + $0xb0] sm:$0xff]
    %v45 = vld [vmem:[%s1 + $0xb8] sm:$0xff]
    %v46 = vld [vmem:[%s1 + $0xc0] sm:$0xff]
    %v47 = vld [vmem:[%s1 + $0xc8] sm:$0xff]
    %v48 = vld [vmem:[%s1 + $0xd0] sm:$0xff]
    %v49 = vld [vmem:[%s1 + $0xd8] sm:$0xff]
    %v50 = vld [vmem:[%s1 + $0xe0] sm:$0xff]
    %v51 = vld [vmem:[%s1 + $0xe8] sm:$0xff]
    %v52 = vld [vmem:[%s1 + $0xf0] sm:$0xff]
    %v53 = vld [vmem:[%s1 + $0xf8] sm:$0xff]
    %v54 = vld [vmem:[%s1 + $0x100] sm:$0xff]
    %v55 = vld [vmem:[%s1 + $0x108] sm:$0xff]
    %v56 = vld [vmem:[%s1 + $0x110] sm:$0xff]
    %v57 = vld [vmem:[%s1 + $0x118] sm:$0xff]
    %v58 = vld [vmem:[%s1 + $0x120] sm:$0xff]
    %v59 = vld [vmem:[%s1 + $0x128] sm:$0xff]
    %v60 = vld [vmem:[%s1 + $0x130] sm:$0xff]
    %v61 = vld [vmem:[%s1 + $0x138] sm:$0xff]
    %v62 = vld [vmem:[%s1 + $0x140] sm:$0xff]
    %v63 = vld [vmem:[%s1 + $0x148] sm:$0xff]
    %v64 = vld [vmem:[%s1 + $0x150] sm:$0xff]
    %v65 = vld [vmem:[%s1 + $0x158] sm:$0xff]
    %v66 = vld [vmem:[%s1 + $0x160] sm:$0xff]
    %v67 = vld [vmem:[%s1 + $0x168] sm:$0xff]
    %v68 = vld [vmem:[%s1 + $0x170] sm:$0xff]
    %v69 = vld [vmem:[%s1 + $0x178] sm:$0xff]
    %v70 = vld [vmem:[%s1 + $0x180] sm:$0xff]
    %v71 = vld [vmem:[%s1 + $0x188] sm:$0xff]
    %v72 = vld [vmem:[%s1 + $0x190] sm:$0xff]
    %v73 = vld [vmem:[%s1 + $0x198] sm:$0xff]
    %v74 = vld [vmem:[%s1 + $0x1a0] sm:$0xff]
    %v75 = vld [vmem:[%s1 + $0x1a8] sm:$0xff]
    %v76 = vld [vmem:[%s1 + $0x1b0] sm:$0xff]
    %v77 = vld [vmem:[%s1 + $0x1b8] sm:$0xff]
    %v78 = vld [vmem:[%s1 + $0x1c0] sm:$0xff]
    %v79 = vld [vmem:[%s1 + $0x1c8] sm:$0xff]
    %v80 = vld [vmem:[%s1 + $0x1d0] sm:$0xff]
    %v81 = vld [vmem:[%s1 + $0x1d8] sm:$0xff]
    %v82 = vld [vmem:[%s1 + $0x1e0] sm:$0xff]
    %v83 = vld [vmem:[%s1 + $0x1e8] sm:$0xff]
    %v84 = vld [vmem:[%s1 + $0x1f0] sm:$0xff]
    %v85 = vld [vmem:[%s1 + $0x1f8] sm:$0xff]
    %v86 = vld [vmem:[%s2] sm:$0x1]
    %v88 = vlaneseq
    %v89 = vshrl.u32 %v88, 7
    %v90 = vsub.s32 0, %v89
    %v91 = vrot.slane %v86, %v90
    %93 = vmatprep.subr.mxu0 0.0
    %94 = vmatpush1.msra.mxu0 %v22
    %95 = vmatprep.subr.mxu0 0.0
    %96 = vmatpush1.msra.mxu0 %v23
    %97 = vmatprep.subr.mxu0 0.0
    %98 = vmatpush1.msra.mxu0 %v24
    %99 = vmatprep.subr.mxu0 0.0
    %100 = vmatpush1.msra.mxu0 %v25
    %101 = vmatprep.subr.mxu0 0.0
    %102 = vmatpush1.msra.mxu0 %v26
    %103 = vmatprep.subr.mxu0 0.0
    %104 = vmatpush1.msra.mxu0 %v27
    %105 = vmatprep.subr.mxu0 0.0
    %106 = vmatpush1.msra.mxu0 %v28
    %107 = vmatprep.subr.mxu0 0.0
    %108 = vmatpush1.msra.mxu0 %v29
    %109 = vmatprep.subr.mxu0 0.0
    %110 = vmatpush1.msra.mxu0 %v30
    %111 = vmatprep.subr.mxu0 0.0
    %112 = vmatpush1.msra.mxu0 %v31
    %113 = vmatprep.subr.mxu0 0.0
    %114 = vmatpush1.msra.mxu0 %v32
    %115 = vmatprep.subr.mxu0 0.0
    %116 = vmatpush1.msra.mxu0 %v33
    %117 = vmatprep.subr.mxu0 0.0
    %118 = vmatpush1.msra.mxu0 %v34
    %119 = vmatprep.subr.mxu0 0.0
    %120 = vmatpush1.msra.mxu0 %v35
    %121 = vmatprep.subr.mxu0 0.0
    %122 = vmatpush1.msra.mxu0 %v36
    %123 = vmatprep.subr.mxu0 0.0
    %124 = vmatpush1.msra.mxu0 %v37
    %125 = vmatprep.subr.mxu0 0.0
    %126 = vmatpush1.msra.mxu0 %v38
    %127 = vmatprep.subr.mxu0 0.0
    %128 = vmatpush1.msra.mxu0 %v39
    %129 = vmatprep.subr.mxu0 0.0
    %130 = vmatpush1.msra.mxu0 %v40
    %131 = vmatprep.subr.mxu0 0.0
    %132 = vmatpush1.msra.mxu0 %v41
    %133 = vmatprep.subr.mxu0 0.0
    %134 = vmatpush1.msra.mxu0 %v42
    %135 = vmatprep.subr.mxu0 0.0
    %136 = vmatpush1.msra.mxu0 %v43
    %137 = vmatprep.subr.mxu0 0.0
    %138 = vmatpush1.msra.mxu0 %v44
    %139 = vmatprep.subr.mxu0 0.0
    %140 = vmatpush1.msra.mxu0 %v45
    %141 = vmatprep.subr.mxu0 0.0
    %142 = vmatpush1.msra.mxu0 %v46
    %143 = vmatprep.subr.mxu0 0.0
    %144 = vmatpush1.msra.mxu0 %v47
    %145 = vmatprep.subr.mxu0 0.0
    %146 = vmatpush1.msra.mxu0 %v48
    %147 = vmatprep.subr.mxu0 0.0
    %148 = vmatpush1.msra.mxu0 %v49
    %149 = vmatprep.subr.mxu0 0.0
    %150 = vmatpush1.msra.mxu0 %v50
    %151 = vmatprep.subr.mxu0 0.0
    %152 = vmatpush1.msra.mxu0 %v51
    %153 = vmatprep.subr.mxu0 0.0
    %154 = vmatpush1.msra.mxu0 %v52
    %155 = vmatprep.subr.mxu0 0.0
    %156 = vmatpush1.msra.mxu0 %v53
    %157 = vmatprep.mubr.f32.mxu0 %v19
    %158 = vmatmul.mubr.f32.gmra.mrb[0].mxu0 %v18
    %v159 = vpop.f32.mrb[0].mxu0
    %v160 = vadd.f32 %v91, %v159
    %v161 = vpop.f32.mrb[0].mxu0
    %162 = vdwg.mxu0
    %163 = vmatprep.subr.mxu0 0.0
    %164 = vmatpush1.msra.mxu0 %v54
    %165 = vmatprep.subr.mxu0 0.0
    %166 = vmatpush1.msra.mxu0 %v55
    %167 = vmatprep.subr.mxu0 0.0
    %168 = vmatpush1.msra.mxu0 %v56
    %169 = vmatprep.subr.mxu0 0.0
    %170 = vmatpush1.msra.mxu0 %v57
    %171 = vmatprep.subr.mxu0 0.0
    %172 = vmatpush1.msra.mxu0 %v58
    %173 = vmatprep.subr.mxu0 0.0
    %174 = vmatpush1.msra.mxu0 %v59
    %175 = vmatprep.subr.mxu0 0.0
    %176 = vmatpush1.msra.mxu0 %v60
    %177 = vmatprep.subr.mxu0 0.0
    %178 = vmatpush1.msra.mxu0 %v61
    %179 = vmatprep.subr.mxu0 0.0
    %180 = vmatpush1.msra.mxu0 %v62
    %181 = vmatprep.subr.mxu0 0.0
    %182 = vmatpush1.msra.mxu0 %v63
    %183 = vmatprep.subr.mxu0 0.0
    %184 = vmatpush1.msra.mxu0 %v64
    %185 = vmatprep.subr.mxu0 0.0
    %186 = vmatpush1.msra.mxu0 %v65
    %187 = vmatprep.subr.mxu0 0.0
    %188 = vmatpush1.msra.mxu0 %v66
    %189 = vmatprep.subr.mxu0 0.0
    %190 = vmatpush1.msra.mxu0 %v67
    %191 = vmatprep.subr.mxu0 0.0
    %192 = vmatpush1.msra.mxu0 %v68
    %193 = vmatprep.subr.mxu0 0.0
    %194 = vmatpush1.msra.mxu0 %v69
    %195 = vmatprep.subr.mxu0 0.0
    %196 = vmatpush1.msra.mxu0 %v70
    %197 = vmatprep.subr.mxu0 0.0
    %198 = vmatpush1.msra.mxu0 %v71
    %199 = vmatprep.subr.mxu0 0.0
    %200 = vmatpush1.msra.mxu0 %v72
    %201 = vmatprep.subr.mxu0 0.0
    %202 = vmatpush1.msra.mxu0 %v73
    %203 = vmatprep.subr.mxu0 0.0
    %204 = vmatpush1.msra.mxu0 %v74
    %205 = vmatprep.subr.mxu0 0.0
    %206 = vmatpush1.msra.mxu0 %v75
    %207 = vmatprep.subr.mxu0 0.0
    %208 = vmatpush1.msra.mxu0 %v76
    %209 = vmatprep.subr.mxu0 0.0
    %210 = vmatpush1.msra.mxu0 %v77
    %211 = vmatprep.subr.mxu0 0.0
    %212 = vmatpush1.msra.mxu0 %v78
    %213 = vmatprep.subr.mxu0 0.0
    %214 = vmatpush1.msra.mxu0 %v79
    %215 = vmatprep.subr.mxu0 0.0
    %216 = vmatpush1.msra.mxu0 %v80
    %217 = vmatprep.subr.mxu0 0.0
    %218 = vmatpush1.msra.mxu0 %v81
    %219 = vmatprep.subr.mxu0 0.0
    %220 = vmatpush1.msra.mxu0 %v82
    %221 = vmatprep.subr.mxu0 0.0
    %222 = vmatpush1.msra.mxu0 %v83
    %223 = vmatprep.subr.mxu0 0.0
    %224 = vmatpush1.msra.mxu0 %v84
    %225 = vmatprep.subr.mxu0 0.0
    %226 = vmatpush1.msra.mxu0 %v85
    %227 = vmatprep.mubr.f32.mxu0 %v21
    %228 = vmatmul.mubr.f32.gmra.mrb[0].mxu0 %v20
    %v229 = vpop.f32.mrb[0].mxu0
    %v230 = vadd.f32 %v160, %v229
    %v231 = vpop.f32.mrb[0].mxu0
    %232 = vdwg.mxu0
    %vm233 = vcmask 261120
    %v234 = vsel %vm233, %v230, -inf
    %235 = vmax.xlane.f32.xlu0 %v234
    %v236 = vpop.xlane.xlu0 %235
    %v237 = vsub.f32 %v230, %v236
    %v238 = vmul.f32 %v237, 1.442695
    %v239 = vpow.pop %v238
    %v240 = vsel %vm233, %v239, 0.0
    %241 = vadd.xlane.f32.xlu0 %v240
    %v242 = vpop.xlane.xlu0 %241
    %v243 = vlog2.pop %v242
    %v244 = vmul.f32 %v243, 0.6931472
    %v245 = vsub.f32 %v237, %v244
    %v246 = vmul.f32 %v245, 1.442695
    %v247 = vpow.pop %v246
    %v248 = vld [vmem:[%s3] sm:$0xff]
    %v249 = vld [vmem:[%s3 + $0x8] sm:$0xff]
    %v250 = vld [vmem:[%s3 + $0x10] sm:$0xff]
    %v251 = vld [vmem:[%s3 + $0x18] sm:$0xff]
    %v253 = vsel %vm233, %v247, 0
    %255 = vmatprep.subr.mxu0 0.0
    %256 = vmatpush1.msra.mxu0 %v248
    %257 = vmatprep.subr.mxu0 0.0
    %258 = vmatpush1.msra.mxu0 %v249
    %259 = vmatprep.subr.mxu0 0.0
    %260 = vmatpush1.msra.mxu0 %v250
    %261 = vmatprep.subr.mxu0 0.0
    %262 = vmatpush1.msra.mxu0 %v251
    %263 = vmatprep.subr.mxu0 0.0
    %264 = vmatpush1.msra.mxu0 0.0
    %265 = vmatprep.subr.mxu0 0.0
    %266 = vmatpush1.msra.mxu0 0.0
    %267 = vmatprep.subr.mxu0 0.0
    %268 = vmatpush1.msra.mxu0 0.0
    %269 = vmatprep.subr.mxu0 0.0
    %270 = vmatpush1.msra.mxu0 0.0
    %271 = vmatprep.subr.mxu0 0.0
    %272 = vmatpush1.msra.mxu0 0.0
    %273 = vmatprep.subr.mxu0 0.0
    %274 = vmatpush1.msra.mxu0 0.0
    %275 = vmatprep.subr.mxu0 0.0
    %276 = vmatpush1.msra.mxu0 0.0
    %277 = vmatprep.subr.mxu0 0.0
    %278 = vmatpush1.msra.mxu0 0.0
    %279 = vmatprep.subr.mxu0 0.0
    %280 = vmatpush1.msra.mxu0 0.0
    %281 = vmatprep.subr.mxu0 0.0
    %282 = vmatpush1.msra.mxu0 0.0
    %283 = vmatprep.subr.mxu0 0.0
    %284 = vmatpush1.msra.mxu0 0.0
    %285 = vmatprep.subr.mxu0 0.0
    %286 = vmatpush1.msra.mxu0 0.0
    %287 = vmatprep.subr.mxu0 0.0
    %288 = vmatpush1.msra.mxu0 0.0
    %289 = vmatprep.subr.mxu0 0.0
    %290 = vmatpush1.msra.mxu0 0.0
    %291 = vmatprep.subr.mxu0 0.0
    %292 = vmatpush1.msra.mxu0 0.0
    %293 = vmatprep.subr.mxu0 0.0
    %294 = vmatpush1.msra.mxu0 0.0
    %295 = vmatprep.subr.mxu0 0.0
    %296 = vmatpush1.msra.mxu0 0.0
    %297 = vmatprep.subr.mxu0 0.0
    %298 = vmatpush1.msra.mxu0 0.0
    %299 = vmatprep.subr.mxu0 0.0
    %300 = vmatpush1.msra.mxu0 0.0
    %301 = vmatprep.subr.mxu0 0.0
    %302 = vmatpush1.msra.mxu0 0.0
    %303 = vmatprep.subr.mxu0 0.0
    %304 = vmatpush1.msra.mxu0 0.0
    %305 = vmatprep.subr.mxu0 0.0
    %306 = vmatpush1.msra.mxu0 0.0
    %307 = vmatprep.subr.mxu0 0.0
    %308 = vmatpush1.msra.mxu0 0.0
    %309 = vmatprep.subr.mxu0 0.0
    %310 = vmatpush1.msra.mxu0 0.0
    %311 = vmatprep.subr.mxu0 0.0
    %312 = vmatpush1.msra.mxu0 0.0
    %313 = vmatprep.subr.mxu0 0.0
    %314 = vmatpush1.msra.mxu0 0.0
    %315 = vmatprep.subr.mxu0 0.0
    %316 = vmatpush1.msra.mxu0 0.0
    %317 = vmatprep.subr.mxu0 0.0
    %318 = vmatpush1.msra.mxu0 0.0
    %319 = vmatprep.mubr.f32.mxu0 0.0
    %320 = vmatmul.mubr.f32.gmra.mrb[0].mxu0 %v253
    %v321 = vpop.f32.mrb[0].mxu0
    %v322 = vadd.f32 0.0, %v321
    %v323 = vpop.f32.mrb[0].mxu0
    %324 = vdwg.mxu0
    %v325 = vmul.f32 %v245, %v247
    %v326 = vsel %vm233, %v325, 0.0
    %327 = vadd.xlane.f32.xlu0 %v326
    %v328 = vpop.xlane.xlu0 %327
    %v329 = vsub.f32 0.0, %v328
    %v330 = vlaneseq
    %v331 = vand.u32 %v330, 127
    %vm332 = vcmp.eq.s32.totalorder %v331, 65
    %v333 = vsel %vm332, %v329, %v322
    %334 = vst [vmem:[#allocation2] sm:$0xff] %v333
    // Predicated region
    $region18: #{tpu_custom_call.1} parent=1 // pred_check
      _
    $region19: #{tpu_custom_call.1} parent=1 // pred_check_branch
      %336 = sbr.rel (0) target = $region21
    $region20: #{tpu_custom_call.1} parent=1 // pred_region
      %s338 = ssub.s32 128, 128
      %339 = vsyncadd [#allocation3], %s338
      %s341 = sshll.u32 [#allocation2], 4
      %s342 = int_to_ptr.vmem [resolvable:$true] %s341
      %344 = dma.vmem_to_hbm [thread:$0]  %s342, 128, %s4, [#allocation3]
    $region21: #{tpu_custom_call.1} parent=1 // pred_fallthru
      _
    // Predicated region
    $region22: #{tpu_custom_call.1} parent=1 // pred_check
      _
    $region23: #{tpu_custom_call.1} parent=1 // pred_check_branch
      %346 = sbr.rel (0) target = $region25
    $region24: #{tpu_custom_call.1} parent=1 // pred_region
      %347 = dma.done [#allocation3], 128
    $region25: #{tpu_custom_call.1} parent=1 // pred_fallthru
      _
    %348 = vsyncpa [#allocation3], 1

</llo_original>
